<compile_context>
chip_gen: v6e
topology: v6e:2x2x1
jax: 0.10.0
libtpu: 0.0.40
codegen_flags: <defaults>
</compile_context>

<pallas_src>
import functools

import jax
import jax.numpy as jnp
from jax.experimental import pallas as pl
from jax.experimental.pallas import tpu as pltpu


LANES = 128                      # vreg lane width; all feature dims padded to this
IN_F, H1_F, H2_F, OUT_F = 50, 25, 10, 2


def _round_up(n, m):
    return (n + m - 1) // m * m


def mlp_kernel(x_ref, w1_ref, b1_ref, w2_ref, b2_ref, w3_ref, b3_ref, o_ref):
    # x: (TB, 50) bf16. Weights: bf16, output dims padded to 128 lanes.
    # Biases: (1, 128) f32 (zero-padded), so bias-add is one unmasked VPU add.
    x = x_ref[...]

    # fc1 + ReLU  (MXU bf16 operands, f32 accumulate, f32 elementwise)
    h1 = jnp.dot(x, w1_ref[...], preferred_element_type=jnp.float32)
    h1 = jnp.maximum(h1 + b1_ref[...], 0.0)

    # fc2 + ReLU
    h2 = jnp.dot(h1.astype(jnp.bfloat16), w2_ref[...],
                 preferred_element_type=jnp.float32)
    h2 = jnp.maximum(h2 + b2_ref[...], 0.0)

    # fc3
    z = jnp.dot(h2.astype(jnp.bfloat16), w3_ref[...],
                preferred_element_type=jnp.float32)
    z = z + b3_ref[...]

    # log_softmax over the 2 real classes.  Padded lanes are forced to -inf so
    # they contribute exp(-inf)=0 to the normalizer; they are sliced off in
    # the wrapper.  Numerically stable via max-subtraction.
    lane = jax.lax.broadcasted_iota(jnp.int32, z.shape, dimension=1)
    z = jnp.where(lane < OUT_F, z, -jnp.inf)
    m = jnp.max(z, axis=-1, keepdims=True)
    zs = z - m
    lse = jnp.log(jnp.sum(jnp.exp(zs), axis=-1, keepdims=True))
    o_ref[...] = zs - lse


def init_params(key):
    """Deterministic init matching nn.Linear shapes, stored as (in, out)."""
    k1, k2, k3, k4, k5, k6 = jax.random.split(key, 6)

    def linear_init(kw, kb, fan_in, fan_out):
        bound = 1.0 / jnp.sqrt(fan_in)
        w = jax.random.uniform(kw, (fan_in, fan_out), jnp.float32, -bound, bound)
        b = jax.random.uniform(kb, (1, fan_out), jnp.float32, -bound, bound)
        return w, b

    w1, b1 = linear_init(k1, k2, IN_F, H1_F)
    w2, b2 = linear_init(k3, k4, H1_F, H2_F)
    w3, b3 = linear_init(k5, k6, H2_F, OUT_F)
    return (w1, b1, w2, b2, w3, b3)


def pack_params(params):
    """One-time host-side repack: pad feature dims to 128 lanes, cast weights
    (MXU operands) to bf16, keep biases f32 for the VPU adds."""
    w1, b1, w2, b2, w3, b3 = params
    w1p = jnp.pad(w1, ((0, 0), (0, LANES - H1_F))).astype(jnp.bfloat16)               # (50, 128)
    w2p = jnp.pad(w2, ((0, LANES - H1_F), (0, LANES - H2_F))).astype(jnp.bfloat16)    # (128, 128)
    w3p = jnp.pad(w3, ((0, LANES - H2_F), (0, LANES - OUT_F))).astype(jnp.bfloat16)   # (128, 128)
    b1p = jnp.pad(b1, ((0, 0), (0, LANES - H1_F))).astype(jnp.float32)                # (1, 128)
    b2p = jnp.pad(b2, ((0, 0), (0, LANES - H2_F))).astype(jnp.float32)                # (1, 128)
    b3p = jnp.pad(b3, ((0, 0), (0, LANES - OUT_F))).astype(jnp.float32)               # (1, 128)
    return (w1p, b1p, w2p, b2p, w3p, b3p)


@functools.partial(jax.jit, static_argnames=("block_rows",))
def simple_nn_forward(x, packed_params, block_rows=1024):
    w1p, b1p, w2p, b2p, w3p, b3p = packed_params
    B = x.shape[0]

    # Row-tile: big enough to pipeline well, shrunk for tiny batches.
    TB = min(block_rows, _round_up(B, 8))
    B_pad = _round_up(B, TB)

    xp = x.astype(jnp.bfloat16)            # halve the dominant HBM read stream
    if B_pad != B:
        xp = jnp.pad(xp, ((0, B_pad - B), (0, 0)))
    n_tiles = B_pad // TB

    const = lambda i: (0, 0)               # weights/biases: resident, DMA'd once

    cost = pl.CostEstimate(
        flops=2 * B_pad * (IN_F * LANES + LANES * LANES + LANES * LANES),
        transcendentals=B_pad * (LANES + 1),          # exp per lane + log per row
        bytes_accessed=(xp.size * xp.dtype.itemsize
                        + sum(int(p.size) * p.dtype.itemsize
                              for p in (w1p, b1p, w2p, b2p, w3p, b3p))
                        + B_pad * LANES * 4),
    )

    out_padded = pl.pallas_call(
        mlp_kernel,
        out_shape=jax.ShapeDtypeStruct((B_pad, LANES), jnp.float32),
        grid=(n_tiles,),
        in_specs=[
            pl.BlockSpec((TB, IN_F), lambda i: (i, 0)),     # x: streamed per tile
            pl.BlockSpec((IN_F, LANES), const),             # W1 (50, 128) bf16
            pl.BlockSpec((1, LANES), const),                # b1
            pl.BlockSpec((LANES, LANES), const),            # W2 (128, 128) bf16
            pl.BlockSpec((1, LANES), const),                # b2
            pl.BlockSpec((LANES, LANES), const),            # W3 (128, 128) bf16
            pl.BlockSpec((1, LANES), const),                # b3
        ],
        out_specs=pl.BlockSpec((TB, LANES), lambda i: (i, 0)),  # lane-dense store
        compiler_params=pltpu.CompilerParams(
            dimension_semantics=("parallel",)),             # megacore on v7x
        cost_estimate=cost,
    )(xp, w1p, b1p, w2p, b2p, w3p, b3p)

    # Drop batch padding and the 126 padded logit lanes.
    return out_padded[:B, :OUT_F]


def reference_forward(x, params):
    w1, b1, w2, b2, w3, b3 = params
    h1 = jnp.maximum(x @ w1 + b1, 0.0)
    h2 = jnp.maximum(h1 @ w2 + b2, 0.0)
    z = h2 @ w3 + b3
    return jax.nn.log_softmax(z, axis=1)


if __name__ == "__main__":
    key = jax.random.PRNGKey(0)
    kx, kp = jax.random.split(key)

    B = 8
    x = jax.random.normal(kx, (B, IN_F), dtype=jnp.float32)
    params = init_params(kp)
    packed = pack_params(params)

    out = simple_nn_forward(x, packed)
    out = jax.block_until_ready(out)

    ref = reference_forward(x, params)
    assert out.shape == (B, OUT_F)
    # bf16 MXU operands with f32 accumulation: tolerance loosened vs pure f32.
    err = float(jnp.max(jnp.abs(out - ref)))
    assert jnp.allclose(out, ref, atol=2e-2, rtol=0.0), f"max abs err = {err}"

    print("KERNEL_OK")
</pallas_src>

<mosaic_0001>
module attributes {stable_mosaic.version = 11 : i64} {
  func.func @mlp_kernel(%arg0: i32, %arg1: memref<8x50xbf16, #tpu.memory_space<vmem>>, %arg2: memref<50x128xbf16, #tpu.memory_space<vmem>>, %arg3: memref<1x128xf32, #tpu.memory_space<vmem>>, %arg4: memref<128x128xbf16, #tpu.memory_space<vmem>>, %arg5: memref<1x128xf32, #tpu.memory_space<vmem>>, %arg6: memref<128x128xbf16, #tpu.memory_space<vmem>>, %arg7: memref<1x128xf32, #tpu.memory_space<vmem>>, %arg8: memref<8x128xf32, #tpu.memory_space<vmem>>) attributes {dimension_semantics = [#tpu.dimension_semantics<parallel>], iteration_bounds = array<i64: 1>, scalar_prefetch = 0 : i64, scratch_operands = 0 : i64, tpu.core_type = #tpu.core_type<tc>, window_params = [{transform_indices = @transform_0, window_bounds = array<i64: 8, 50>}, {pipeline_mode = #tpu.pipeline_mode<synchronous>, transform_indices = @transform_1, window_bounds = array<i64: 50, 128>}, {pipeline_mode = #tpu.pipeline_mode<synchronous>, transform_indices = @transform_2, window_bounds = array<i64: 1, 128>}, {pipeline_mode = #tpu.pipeline_mode<synchronous>, transform_indices = @transform_3, window_bounds = array<i64: 128, 128>}, {pipeline_mode = #tpu.pipeline_mode<synchronous>, transform_indices = @transform_4, window_bounds = array<i64: 1, 128>}, {pipeline_mode = #tpu.pipeline_mode<synchronous>, transform_indices = @transform_5, window_bounds = array<i64: 128, 128>}, {pipeline_mode = #tpu.pipeline_mode<synchronous>, transform_indices = @transform_6, window_bounds = array<i64: 1, 128>}, {transform_indices = @transform_7, window_bounds = array<i64: 8, 128>}]} {
    %c0 = arith.constant 0 : index
    %c0_0 = arith.constant 0 : index
    %0 = vector.load %arg1[%c0, %c0_0] : memref<8x50xbf16, #tpu.memory_space<vmem>>, vector<8x50xbf16>
    %c0_1 = arith.constant 0 : index
    %c0_2 = arith.constant 0 : index
    %1 = vector.load %arg2[%c0_1, %c0_2] : memref<50x128xbf16, #tpu.memory_space<vmem>>, vector<50x128xbf16>
    %cst = arith.constant dense<0.000000e+00> : vector<8x128xf32>
    %2 = tpu.matmul %0, %1, %cst {dimension_numbers = #tpu.dot_dimension_numbers<[1], [0], [0], [1], [0, 0, 1, 1], [], []>} : vector<8x50xbf16>, vector<50x128xbf16>, vector<8x128xf32> -> vector<8x128xf32>
    %c0_3 = arith.constant 0 : index
    %c0_4 = arith.constant 0 : index
    %3 = vector.load %arg3[%c0_3, %c0_4] : memref<1x128xf32, #tpu.memory_space<vmem>>, vector<1x128xf32>
    %4 = vector.broadcast %3 : vector<1x128xf32> to vector<8x128xf32>
    %5 = arith.addf %2, %4 : vector<8x128xf32>
    %cst_5 = arith.constant 0.000000e+00 : f32
    %6 = vector.broadcast %cst_5 : f32 to vector<8x128xf32>
    %7 = arith.maximumf %5, %6 : vector<8x128xf32>
    %8 = arith.truncf %7 : vector<8x128xf32> to vector<8x128xbf16>
    %c0_6 = arith.constant 0 : index
    %c0_7 = arith.constant 0 : index
    %9 = vector.load %arg4[%c0_6, %c0_7] : memref<128x128xbf16, #tpu.memory_space<vmem>>, vector<128x128xbf16>
    %cst_8 = arith.constant dense<0.000000e+00> : vector<8x128xf32>
    %10 = tpu.matmul %8, %9, %cst_8 {dimension_numbers = #tpu.dot_dimension_numbers<[1], [0], [0], [1], [0, 0, 1, 1], [], []>} : vector<8x128xbf16>, vector<128x128xbf16>, vector<8x128xf32> -> vector<8x128xf32>
    %c0_9 = arith.constant 0 : index
    %c0_10 = arith.constant 0 : index
    %11 = vector.load %arg5[%c0_9, %c0_10] : memref<1x128xf32, #tpu.memory_space<vmem>>, vector<1x128xf32>
    %12 = vector.broadcast %11 : vector<1x128xf32> to vector<8x128xf32>
    %13 = arith.addf %10, %12 : vector<8x128xf32>
    %cst_11 = arith.constant 0.000000e+00 : f32
    %14 = vector.broadcast %cst_11 : f32 to vector<8x128xf32>
    %15 = arith.maximumf %13, %14 : vector<8x128xf32>
    %16 = arith.truncf %15 : vector<8x128xf32> to vector<8x128xbf16>
    %c0_12 = arith.constant 0 : index
    %c0_13 = arith.constant 0 : index
    %17 = vector.load %arg6[%c0_12, %c0_13] : memref<128x128xbf16, #tpu.memory_space<vmem>>, vector<128x128xbf16>
    %cst_14 = arith.constant dense<0.000000e+00> : vector<8x128xf32>
    %18 = tpu.matmul %16, %17, %cst_14 {dimension_numbers = #tpu.dot_dimension_numbers<[1], [0], [0], [1], [0, 0, 1, 1], [], []>} : vector<8x128xbf16>, vector<128x128xbf16>, vector<8x128xf32> -> vector<8x128xf32>
    %c0_15 = arith.constant 0 : index
    %c0_16 = arith.constant 0 : index
    %19 = vector.load %arg7[%c0_15, %c0_16] : memref<1x128xf32, #tpu.memory_space<vmem>>, vector<1x128xf32>
    %20 = vector.broadcast %19 : vector<1x128xf32> to vector<8x128xf32>
    %21 = arith.addf %18, %20 : vector<8x128xf32>
    %22 = tpu.iota {dimensions = array<i32: 1>} : vector<8x128xi32>
    %c2_i32 = arith.constant 2 : i32
    %23 = vector.broadcast %c2_i32 : i32 to vector<8x128xi32>
    %24 = arith.cmpi slt, %22, %23 : vector<8x128xi32>
    %cst_17 = arith.constant 0xFF800000 : f32
    %25 = vector.broadcast %cst_17 : f32 to vector<8x128xf32>
    %26 = arith.select %24, %21, %25 : vector<8x128xi1>, vector<8x128xf32>
    %cst_18 = arith.constant dense<0xFF800000> : vector<8xf32>
    %27 = vector.multi_reduction <maximumf>, %26, %cst_18 [1] : vector<8x128xf32> to vector<8xf32>
    %28 = vector.shape_cast %27 : vector<8xf32> to vector<8x1xf32>
    %29 = vector.broadcast %28 : vector<8x1xf32> to vector<8x128xf32>
    %30 = arith.subf %26, %29 : vector<8x128xf32>
    %31 = math.exp %30 : vector<8x128xf32>
    %cst_19 = arith.constant dense<0.000000e+00> : vector<8xf32>
    %32 = vector.multi_reduction <add>, %31, %cst_19 [1] : vector<8x128xf32> to vector<8xf32>
    %33 = vector.shape_cast %32 : vector<8xf32> to vector<8x1xf32>
    %34 = math.log %33 : vector<8x1xf32>
    %35 = vector.broadcast %34 : vector<8x1xf32> to vector<8x128xf32>
    %36 = arith.subf %30, %35 : vector<8x128xf32>
    %c0_20 = arith.constant 0 : index
    %c0_21 = arith.constant 0 : index
    %37 = vector.load %arg8[%c0_20, %c0_21] : memref<8x128xf32, #tpu.memory_space<vmem>>, vector<8x128xf32>
    tpu.vector_store %arg8[%c0_20, %c0_21], %36 {strides = array<i32>} : memref<8x128xf32, #tpu.memory_space<vmem>>, vector<8x128xf32>,
    return
  }
  func.func @transform_0(%arg0: i32) -> (i32, i32) {
    %c0_i32 = arith.constant 0 : i32
    %c0_i32_0 = arith.constant 0 : i32
    return %arg0, %c0_i32 : i32, i32
  }
  func.func @transform_1(%arg0: i32) -> (i32, i32) {
    %c0_i32 = arith.constant 0 : i32
    %c0_i32_0 = arith.constant 0 : i32
    %c0_i32_1 = arith.constant 0 : i32
    return %c0_i32, %c0_i32_0 : i32, i32
  }
  func.func @transform_2(%arg0: i32) -> (i32, i32) {
    %c0_i32 = arith.constant 0 : i32
    %c0_i32_0 = arith.constant 0 : i32
    %c0_i32_1 = arith.constant 0 : i32
    return %c0_i32, %c0_i32_0 : i32, i32
  }
  func.func @transform_3(%arg0: i32) -> (i32, i32) {
    %c0_i32 = arith.constant 0 : i32
    %c0_i32_0 = arith.constant 0 : i32
    %c0_i32_1 = arith.constant 0 : i32
    return %c0_i32, %c0_i32_0 : i32, i32
  }
  func.func @transform_4(%arg0: i32) -> (i32, i32) {
    %c0_i32 = arith.constant 0 : i32
    %c0_i32_0 = arith.constant 0 : i32
    %c0_i32_1 = arith.constant 0 : i32
    return %c0_i32, %c0_i32_0 : i32, i32
  }
  func.func @transform_5(%arg0: i32) -> (i32, i32) {
    %c0_i32 = arith.constant 0 : i32
    %c0_i32_0 = arith.constant 0 : i32
    %c0_i32_1 = arith.constant 0 : i32
    return %c0_i32, %c0_i32_0 : i32, i32
  }
  func.func @transform_6(%arg0: i32) -> (i32, i32) {
    %c0_i32 = arith.constant 0 : i32
    %c0_i32_0 = arith.constant 0 : i32
    %c0_i32_1 = arith.constant 0 : i32
    return %c0_i32, %c0_i32_0 : i32, i32
  }
  func.func @transform_7(%arg0: i32) -> (i32, i32) {
    %c0_i32 = arith.constant 0 : i32
    %c0_i32_0 = arith.constant 0 : i32
    return %arg0, %c0_i32 : i32, i32
  }
}

</mosaic_0001>

<llo_original>
// kernel: simple_nn_forward.1
$region0: #{simple_nn_forward.1}
  #allocation0 [shape = 'u32[]', space=smem, size = 0x4, offset = 0x4, fixed_abs, tag = 'smem constant byte address 0x4 - core index']
  #allocation1 [shape = 'u32[144,128]{1,0:T(1,128)}', space=vmem, size = 0x12000, scoped, tag = 'internal scratch']
  %s0 = inlined_call_operand.vmem [shape: bf16[8,50], index: 0, kind: input, shape index: {}]
  %s1 = inlined_call_operand.hbm [shape: bf16[50,128], index: 1, kind: input, shape index: {}]
  %s2 = inlined_call_operand.vmem [shape: f32[1,128], index: 2, kind: input, shape index: {}]
  %s3 = inlined_call_operand.hbm [shape: bf16[128,128], index: 3, kind: input, shape index: {}]
  %s4 = inlined_call_operand.vmem [shape: f32[1,128], index: 4, kind: input, shape index: {}]
  %s5 = inlined_call_operand.hbm [shape: bf16[128,128], index: 5, kind: input, shape index: {}]
  %s6 = inlined_call_operand.vmem [shape: f32[1,128], index: 6, kind: input, shape index: {}]
  %s7 = inlined_call_operand.vmem [shape: f32[8,128], index: 7, kind: output, shape index: {}]
  %s8 = sld [smem:[#allocation0]]
  $region50: #{simple_nn_forward.1} parent=0
    _
  %s10 = ssub.s32 1, %s8
  %s11 = scalar_select 0, %s10, %s8
  $region1: #{simple_nn_forward.1} parent=0
    #allocation2 [shape = 'u8[14336]{0}', space=vmem, size = 0x3800, scoped, tag = 'input window, operand 1, single buffered']
    #allocation3 [shape = 's32[1]{0}', space=sflag, size = 0x4, scoped, tag = 'scoped memory for simple_nn_forward.1']
    #allocation4 [shape = 'u8[32768]{0}', space=vmem, size = 0x8000, scoped, tag = 'input window, operand 3, single buffered']
    #allocation5 [shape = 's32[1]{0}', space=sflag, size = 0x4, scoped, tag = 'scoped memory for simple_nn_forward.1']
    #allocation6 [shape = 'u8[32768]{0}', space=vmem, size = 0x8000, scoped, tag = 'input window, operand 5, single buffered']
    %12 = vsyncpa [#allocation3], 0
    %13 = vsyncpa [#allocation5], 0
    // Predicated region
    $region2: #{simple_nn_forward.1} parent=1 // pred_check
      _
    $region3: #{simple_nn_forward.1} parent=1 // pred_check_branch
      %15 = sbr.rel (0) target = $region5
    $region4: #{simple_nn_forward.1} parent=1 // pred_region
      _
    $region5: #{simple_nn_forward.1} parent=1 // pred_fallthru
      _
    // Predicated region
    $region6: #{simple_nn_forward.1} parent=1 // pred_check
      _
    $region7: #{simple_nn_forward.1} parent=1 // pred_check_branch
      %17 = sbr.rel (0) target = $region9
    $region8: #{simple_nn_forward.1} parent=1 // pred_region
      %s19 = ssub.s32 448, 448
      %20 = vsyncadd [#allocation3], %s19
      %s21 = sshll.u32 [#allocation2], 4
      %s22 = int_to_ptr.vmem [resolvable:$true] %s21
      %27 = dma.hbm_to_vmem [thread:$0]  %s1, 448, %s22, [#allocation3], 64, 64, 4
    $region9: #{simple_nn_forward.1} parent=1 // pred_fallthru
      _
    // Predicated region
    $region10: #{simple_nn_forward.1} parent=1 // pred_check
      _
    $region11: #{simple_nn_forward.1} parent=1 // pred_check_branch
      %29 = sbr.rel (0) target = $region13
    $region12: #{simple_nn_forward.1} parent=1 // pred_region
      _
    $region13: #{simple_nn_forward.1} parent=1 // pred_fallthru
      _
    // Predicated region
    $region14: #{simple_nn_forward.1} parent=1 // pred_check
      _
    $region15: #{simple_nn_forward.1} parent=1 // pred_check_branch
      %31 = sbr.rel (0) target = $region17
    $region16: #{simple_nn_forward.1} parent=1 // pred_region
      %s33 = ssub.s32 1024, 1024
      %34 = vsyncadd [#allocation5], %s33
      %s35 = sshll.u32 [#allocation4], 4
      %s36 = int_to_ptr.vmem [resolvable:$true] %s35
      %41 = dma.hbm_to_vmem [thread:$0]  %s3, 1024, %s36, [#allocation5], 64, 64, 4
    $region17: #{simple_nn_forward.1} parent=1 // pred_fallthru
      _
    // Predicated region
    $region18: #{simple_nn_forward.1} parent=1 // pred_check
      _
    $region19: #{simple_nn_forward.1} parent=1 // pred_check_branch
      %43 = sbr.rel (0) target = $region21
    $region20: #{simple_nn_forward.1} parent=1 // pred_region
      _
    $region21: #{simple_nn_forward.1} parent=1 // pred_fallthru
      _
    // Predicated region
    $region22: #{simple_nn_forward.1} parent=1 // pred_check
      _
    $region23: #{simple_nn_forward.1} parent=1 // pred_check_branch
      %45 = sbr.rel (0) target = $region25
    $region24: #{simple_nn_forward.1} parent=1 // pred_region
      %s47 = ssub.s32 1024, 1024
      %48 = vsyncadd [#allocation5], %s47
      %s49 = sshll.u32 [#allocation6], 4
      %s50 = int_to_ptr.vmem [resolvable:$true] %s49
      %55 = dma.hbm_to_vmem [thread:$0]  %s5, 1024, %s50, [#allocation5], 64, 64, 4
    $region25: #{simple_nn_forward.1} parent=1 // pred_fallthru
      _
    // Predicated region
    $region26: #{simple_nn_forward.1} parent=1 // pred_check
      _
    $region27: #{simple_nn_forward.1} parent=1 // pred_check_branch
      %57 = sbr.rel (0) target = $region29
    $region28: #{simple_nn_forward.1} parent=1 // pred_region
      _
    $region29: #{simple_nn_forward.1} parent=1 // pred_fallthru
      _
    // Predicated region
    $region30: #{simple_nn_forward.1} parent=1 // pred_check
      _
    $region31: #{simple_nn_forward.1} parent=1 // pred_check_branch
      %59 = sbr.rel (0) target = $region33
    $region32: #{simple_nn_forward.1} parent=1 // pred_region
      %60 = dma.done [#allocation3], 448
    $region33: #{simple_nn_forward.1} parent=1 // pred_fallthru
      _
    // Predicated region
    $region34: #{simple_nn_forward.1} parent=1 // pred_check
      _
    $region35: #{simple_nn_forward.1} parent=1 // pred_check_branch
      %62 = sbr.rel (0) target = $region37
    $region36: #{simple_nn_forward.1} parent=1 // pred_region
      %63 = dma.done [#allocation5], 1024
    $region37: #{simple_nn_forward.1} parent=1 // pred_fallthru
      _
    // Predicated region
    $region38: #{simple_nn_forward.1} parent=1 // pred_check
      _
    $region39: #{simple_nn_forward.1} parent=1 // pred_check_branch
      %65 = sbr.rel (0) target = $region41
    $region40: #{simple_nn_forward.1} parent=1 // pred_region
      %66 = dma.done [#allocation5], 1024
    $region41: #{simple_nn_forward.1} parent=1 // pred_fallthru
      _
    %v68 = vld [vmem:[%s0] sm:$0xf]
    %v69 = vld [vmem:[#allocation2] sm:$0xf]
    %v70 = vld [vmem:[#allocation2 + $0x4] sm:$0xf]
    %v71 = vld [vmem:[#allocation2 + $0x8] sm:$0xf]
    %v72 = vld [vmem:[#allocation2 + $0xc] sm:$0xf]
    %v73 = vld [vmem:[#allocation2 + $0x10] sm:$0xf]
    %v74 = vld [vmem:[#allocation2 + $0x14] sm:$0xf]
    %v75 = vld [vmem:[#allocation2 + $0x18] sm:$0x1]
    %v76 = vld [vmem:[%s2] sm:$0x1]
    %v78 = vlaneseq
    %v79 = vshrl.u32 %v78, 7
    %v80 = vsub.s32 0, %v79
    %v81 = vrot.slane %v76, %v80
    %v90 = vunpack.c.l.b16 %v69
    %v91 = vunpack.c.l.b16 %v70
    %v92 = vunpack.c.l.b16 %v71
    %v93 = vunpack.c.l.b16 %v72
    %v94 = vunpack.c.l.b16 %v73
    %v95 = vunpack.c.l.b16 %v74
    %v96 = vunpack.c.l.b16 %v75
    %v97 = vpack.c.b16 %v91, %v90
    %v98 = vpack.c.b16 %v93, %v92
    %v99 = vpack.c.b16 %v95, %v94
    %v100 = vpack.c.b16 %v96, %v96
    %vm104 = vcmask 408576
    %v106 = vsel %vm104, %v68, 0
    %vm108 = vcmask 1040384
    %v110 = vsel %vm108, %v100, 0
    %112 = vmatprep.subr.bf16.mxu0 0
    %113 = vmatpush1.bf16.msra.mxu0 0
    %114 = vmatprep.subr.bf16.mxu0 0
    %115 = vmatpush1.bf16.msra.mxu0 0
    %116 = vmatprep.subr.bf16.mxu0 0
    %117 = vmatpush1.bf16.msra.mxu0 0
    %118 = vmatprep.subr.bf16.mxu0 0
    %119 = vmatpush1.bf16.msra.mxu0 0
    %120 = vmatprep.subr.bf16.mxu0 0
    %121 = vmatpush1.bf16.msra.mxu0 %v110
    %122 = vmatprep.subr.bf16.mxu0 0
    %123 = vmatpush1.bf16.msra.mxu0 %v99
    %124 = vmatprep.subr.bf16.mxu0 0
    %125 = vmatpush1.bf16.msra.mxu0 %v98
    %126 = vmatprep.subr.bf16.mxu0 0
    %127 = vmatpush1.bf16.msra.mxu0 %v97
    %128 = vmatprep.subr.bf16.mxu0 0
    %129 = vmatpush2.bf16.msra.mxu0 0
    %130 = vmatprep.subr.bf16.mxu0 0
    %131 = vmatpush2.bf16.msra.mxu0 0
    %132 = vmatprep.subr.bf16.mxu0 0
    %133 = vmatpush2.bf16.msra.mxu0 0
    %134 = vmatprep.subr.bf16.mxu0 0
    %135 = vmatpush2.bf16.msra.mxu0 0
    %136 = vmatprep.subr.bf16.mxu0 0
    %137 = vmatpush2.bf16.msra.mxu0 0
    %138 = vmatprep.subr.bf16.mxu0 0
    %139 = vmatpush2.bf16.msra.mxu0 0
    %140 = vmatprep.subr.bf16.mxu0 0
    %141 = vmatpush2.bf16.msra.mxu0 0
    %142 = vmatprep.subr.bf16.mxu0 0
    %143 = vmatpush2.bf16.msra.mxu0 0
    %144 = vmatprep.mubr.bf16.mxu0 0
    %145 = vmatmul.mubr.bf16.gmra.mxu0 %v106
    %v146 = vpop.f32.mrf.mxu0
    %v147 = vadd.f32 %v81, %v146
    %v148 = vpop.f32.mrf.mxu0
    %v149 = vpop.f32.mrf.mxu0
    %v150 = vpop.f32.mrf.mxu0
    %151 = vdwg.mxu0
    %v152 = vmax.f32 %v147, 0.0
    %v153 = vpack.c.bf16 %v152, %v152
    %v154 = vld [vmem:[#allocation4] sm:$0xf]
    %v155 = vld [vmem:[#allocation4 + $0x4] sm:$0xf]
    %v156 = vld [vmem:[#allocation4 + $0x8] sm:$0xf]
    %v157 = vld [vmem:[#allocation4 + $0xc] sm:$0xf]
    %v158 = vld [vmem:[#allocation4 + $0x10] sm:$0xf]
    %v159 = vld [vmem:[#allocation4 + $0x14] sm:$0xf]
    %v160 = vld [vmem:[#allocation4 + $0x18] sm:$0xf]
    %v161 = vld [vmem:[#allocation4 + $0x1c] sm:$0xf]
    %v162 = vld [vmem:[#allocation4 + $0x20] sm:$0xf]
    %v163 = vld [vmem:[#allocation4 + $0x24] sm:$0xf]
    %v164 = vld [vmem:[#allocation4 + $0x28] sm:$0xf]
    %v165 = vld [vmem:[#allocation4 + $0x2c] sm:$0xf]
    %v166 = vld [vmem:[#allocation4 + $0x30] sm:$0xf]
    %v167 = vld [vmem:[#allocation4 + $0x34] sm:$0xf]
    %v168 = vld [vmem:[#allocation4 + $0x38] sm:$0xf]
    %v169 = vld [vmem:[#allocation4 + $0x3c] sm:$0xf]
    %v170 = vld [vmem:[%s4] sm:$0x1]
    %v172 = vlaneseq
    %v173 = vshrl.u32 %v172, 7
    %v174 = vsub.s32 0, %v173
    %v175 = vrot.slane %v170, %v174
    %v193 = vunpack.c.l.b16 %v154
    %v194 = vunpack.c.l.b16 %v155
    %v195 = vunpack.c.l.b16 %v156
    %v196 = vunpack.c.l.b16 %v157
    %v197 = vunpack.c.l.b16 %v158
    %v198 = vunpack.c.l.b16 %v159
    %v199 = vunpack.c.l.b16 %v160
    %v200 = vunpack.c.l.b16 %v161
    %v201 = vunpack.c.l.b16 %v162
    %v202 = vunpack.c.l.b16 %v163
    %v203 = vunpack.c.l.b16 %v164
    %v204 = vunpack.c.l.b16 %v165
    %v205 = vunpack.c.l.b16 %v166
    %v206 = vunpack.c.l.b16 %v167
    %v207 = vunpack.c.l.b16 %v168
    %v208 = vunpack.c.l.b16 %v169
    %v209 = vpack.c.b16 %v194, %v193
    %v210 = vpack.c.b16 %v196, %v195
    %v211 = vpack.c.b16 %v198, %v197
    %v212 = vpack.c.b16 %v200, %v199
    %v213 = vpack.c.b16 %v202, %v201
    %v214 = vpack.c.b16 %v204, %v203
    %v215 = vpack.c.b16 %v206, %v205
    %v216 = vpack.c.b16 %v208, %v207
    %225 = vmatprep.subr.bf16.mxu0 0
    %226 = vmatpush1.bf16.msra.mxu0 %v216
    %227 = vmatprep.subr.bf16.mxu0 0
    %228 = vmatpush1.bf16.msra.mxu0 %v215
    %229 = vmatprep.subr.bf16.mxu0 0
    %230 = vmatpush1.bf16.msra.mxu0 %v214
    %231 = vmatprep.subr.bf16.mxu0 0
    %232 = vmatpush1.bf16.msra.mxu0 %v213
    %233 = vmatprep.subr.bf16.mxu0 0
    %234 = vmatpush1.bf16.msra.mxu0 %v212
    %235 = vmatprep.subr.bf16.mxu0 0
    %236 = vmatpush1.bf16.msra.mxu0 %v211
    %237 = vmatprep.subr.bf16.mxu0 0
    %238 = vmatpush1.bf16.msra.mxu0 %v210
    %239 = vmatprep.subr.bf16.mxu0 0
    %240 = vmatpush1.bf16.msra.mxu0 %v209
    %241 = vmatprep.subr.bf16.mxu0 0
    %242 = vmatpush2.bf16.msra.mxu0 0
    %243 = vmatprep.subr.bf16.mxu0 0
    %244 = vmatpush2.bf16.msra.mxu0 0
    %245 = vmatprep.subr.bf16.mxu0 0
    %246 = vmatpush2.bf16.msra.mxu0 0
    %247 = vmatprep.subr.bf16.mxu0 0
    %248 = vmatpush2.bf16.msra.mxu0 0
    %249 = vmatprep.subr.bf16.mxu0 0
    %250 = vmatpush2.bf16.msra.mxu0 0
    %251 = vmatprep.subr.bf16.mxu0 0
    %252 = vmatpush2.bf16.msra.mxu0 0
    %253 = vmatprep.subr.bf16.mxu0 0
    %254 = vmatpush2.bf16.msra.mxu0 0
    %255 = vmatprep.subr.bf16.mxu0 0
    %256 = vmatpush2.bf16.msra.mxu0 0
    %257 = vmatprep.mubr.bf16.mxu0 0
    %258 = vmatmul.mubr.bf16.gmra.mxu0 %v153
    %v259 = vpop.f32.mrf.mxu0
    %v260 = vadd.f32 %v175, %v259
    %v261 = vpop.f32.mrf.mxu0
    %v262 = vpop.f32.mrf.mxu0
    %v263 = vpop.f32.mrf.mxu0
    %264 = vdwg.mxu0
    %v265 = vmax.f32 %v260, 0.0
    %v266 = vpack.c.bf16 %v265, %v265
    %v267 = vld [vmem:[#allocation6] sm:$0xf]
    %v268 = vld [vmem:[#allocation6 + $0x4] sm:$0xf]
    %v269 = vld [vmem:[#allocation6 + $0x8] sm:$0xf]
    %v270 = vld [vmem:[#allocation6 + $0xc] sm:$0xf]
    %v271 = vld [vmem:[#allocation6 + $0x10] sm:$0xf]
    %v272 = vld [vmem:[#allocation6 + $0x14] sm:$0xf]
    %v273 = vld [vmem:[#allocation6 + $0x18] sm:$0xf]
    %v274 = vld [vmem:[#allocation6 + $0x1c] sm:$0xf]
    %v275 = vld [vmem:[#allocation6 + $0x20] sm:$0xf]
    %v276 = vld [vmem:[#allocation6 + $0x24] sm:$0xf]
    %v277 = vld [vmem:[#allocation6 + $0x28] sm:$0xf]
    %v278 = vld [vmem:[#allocation6 + $0x2c] sm:$0xf]
    %v279 = vld [vmem:[#allocation6 + $0x30] sm:$0xf]
    %v280 = vld [vmem:[#allocation6 + $0x34] sm:$0xf]
    %v281 = vld [vmem:[#allocation6 + $0x38] sm:$0xf]
    %v282 = vld [vmem:[#allocation6 + $0x3c] sm:$0xf]
    %v283 = vld [vmem:[%s6] sm:$0x1]
    %v285 = vlaneseq
    %v286 = vshrl.u32 %v285, 7
    %v287 = vsub.s32 0, %v286
    %v288 = vrot.slane %v283, %v287
    %v306 = vunpack.c.l.b16 %v267
    %v307 = vunpack.c.l.b16 %v268
    %v308 = vunpack.c.l.b16 %v269
    %v309 = vunpack.c.l.b16 %v270
    %v310 = vunpack.c.l.b16 %v271
    %v311 = vunpack.c.l.b16 %v272
    %v312 = vunpack.c.l.b16 %v273
    %v313 = vunpack.c.l.b16 %v274
    %v314 = vunpack.c.l.b16 %v275
    %v315 = vunpack.c.l.b16 %v276
    %v316 = vunpack.c.l.b16 %v277
    %v317 = vunpack.c.l.b16 %v278
    %v318 = vunpack.c.l.b16 %v279
    %v319 = vunpack.c.l.b16 %v280
    %v320 = vunpack.c.l.b16 %v281
    %v321 = vunpack.c.l.b16 %v282
    %v322 = vpack.c.b16 %v307, %v306
    %v323 = vpack.c.b16 %v309, %v308
    %v324 = vpack.c.b16 %v311, %v310
    %v325 = vpack.c.b16 %v313, %v312
    %v326 = vpack.c.b16 %v315, %v314
    %v327 = vpack.c.b16 %v317, %v316
    %v328 = vpack.c.b16 %v319, %v318
    %v329 = vpack.c.b16 %v321, %v320
    %338 = vmatprep.subr.bf16.mxu0 0
    %339 = vmatpush1.bf16.msra.mxu0 %v329
    %340 = vmatprep.subr.bf16.mxu0 0
    %341 = vmatpush1.bf16.msra.mxu0 %v328
    %342 = vmatprep.subr.bf16.mxu0 0
    %343 = vmatpush1.bf16.msra.mxu0 %v327
    %344 = vmatprep.subr.bf16.mxu0 0
    %345 = vmatpush1.bf16.msra.mxu0 %v326
    %346 = vmatprep.subr.bf16.mxu0 0
    %347 = vmatpush1.bf16.msra.mxu0 %v325
    %348 = vmatprep.subr.bf16.mxu0 0
    %349 = vmatpush1.bf16.msra.mxu0 %v324
    %350 = vmatprep.subr.bf16.mxu0 0
    %351 = vmatpush1.bf16.msra.mxu0 %v323
    %352 = vmatprep.subr.bf16.mxu0 0
    %353 = vmatpush1.bf16.msra.mxu0 %v322
    %354 = vmatprep.subr.bf16.mxu0 0
    %355 = vmatpush2.bf16.msra.mxu0 0
    %356 = vmatprep.subr.bf16.mxu0 0
    %357 = vmatpush2.bf16.msra.mxu0 0
    %358 = vmatprep.subr.bf16.mxu0 0
    %359 = vmatpush2.bf16.msra.mxu0 0
    %360 = vmatprep.subr.bf16.mxu0 0
    %361 = vmatpush2.bf16.msra.mxu0 0
    %362 = vmatprep.subr.bf16.mxu0 0
    %363 = vmatpush2.bf16.msra.mxu0 0
    %364 = vmatprep.subr.bf16.mxu0 0
    %365 = vmatpush2.bf16.msra.mxu0 0
    %366 = vmatprep.subr.bf16.mxu0 0
    %367 = vmatpush2.bf16.msra.mxu0 0
    %368 = vmatprep.subr.bf16.mxu0 0
    %369 = vmatpush2.bf16.msra.mxu0 0
    %370 = vmatprep.mubr.bf16.mxu0 0
    %371 = vmatmul.mubr.bf16.gmra.mxu0 %v266
    %v372 = vpop.f32.mrf.mxu0
    %v373 = vadd.f32 %v288, %v372
    %v374 = vpop.f32.mrf.mxu0
    %v375 = vpop.f32.mrf.mxu0
    %v376 = vpop.f32.mrf.mxu0
    %377 = vdwg.mxu0
    %v378 = vlaneseq
    %v379 = vand.u32 %v378, 127
    %vm380 = vcmp.lt.s32.totalorder %v379, 2
    %v381 = vsel %vm380, %v373, -inf
    %382 = vmax.xlane.f32.xlu0 %v381
    %v383 = vpop.xlane.xlu0 %382
    %v384 = vsub.f32 %v381, %v383
    %v385 = vmul.f32 %v384, 1.442695
    %v386 = vpow.pop %v385
    %387 = vadd.xlane.f32.xlu0 %v386
    %v388 = vpop.xlane.xlu0 %387
    %v389 = vlog2.pop %v388
    %v390 = vmul.f32 %v389, 0.6931472
    %v391 = vsub.f32 %v384, %v390
    %392 = vst [vmem:[%s7] sm:$0xff] %v391
    // Predicated region
    $region42: #{simple_nn_forward.1} parent=1 // pred_check
      _
    $region43: #{simple_nn_forward.1} parent=1 // pred_check_branch
      %394 = sbr.rel (0) target = $region45
    $region44: #{simple_nn_forward.1} parent=1 // pred_region
      _
    $region45: #{simple_nn_forward.1} parent=1 // pred_fallthru
      _
    // Predicated region
    $region46: #{simple_nn_forward.1} parent=1 // pred_check
      _
    $region47: #{simple_nn_forward.1} parent=1 // pred_check_branch
      %396 = sbr.rel (0) target = $region49
    $region48: #{simple_nn_forward.1} parent=1 // pred_region
      _
    $region49: #{simple_nn_forward.1} parent=1 // pred_fallthru
      _
    %397 = vsyncpa [#allocation3], 1
    %398 = vsyncpa [#allocation5], 1

</llo_original>
